<compile_context>
chip_gen: v5e
topology: v5e:2x2
jax: 0.10.0
libtpu: 0.0.40
codegen_flags: <defaults>
</compile_context>

<pallas_src>
import functools

import jax
import jax.numpy as jnp
from jax.experimental import pallas as pl
from jax.experimental.pallas import tpu as pltpu

LANES = 128


def _round_up(n, m):
    return ((n + m - 1) // m) * m


# --------------------------------------------------------------------------- kernel
def _lstm_policy_kernel(x_ref, h_ref, c_ref, w_ref, b_ref,
                        head_ref, h_out_ref, c_out_ref,
                        *, H, k1, r_ih0, r_ih1, r_hh0, r_hh1, r_hd0, r_hd1):
    x = x_ref[...]                      # (B, k1)  f32 (zero padded past input_dim)
    h_prev = h_ref[...]                 # (B, H)   f32
    c_prev = c_ref[...]                 # (B, H)   f32
    b_all = b_ref[...]                  # (8, 128) f32
    b1 = b_all[0:1, :]
    b_g = b_all[1:2, :]
    b_hd = b_all[2:3, :]

    # Recurrent gate contribution first: independent of fc1, so the Mosaic
    # scheduler can overlap this MXU push with the fc1 matmul / ReLU.
    g_h = jnp.dot(h_prev.astype(jnp.bfloat16), w_ref[r_hh0:r_hh1, :],
                  preferred_element_type=jnp.float32)                  # (B, 4H)

    # fc1 + ReLU. K is padded to k1 (pad rows of the weight block are zero).
    h1 = jnp.dot(x.astype(jnp.bfloat16), w_ref[0:k1, :],
                 preferred_element_type=jnp.float32) + b1
    h1 = jnp.maximum(h1, 0.0)           # (B, 128); lanes >= hidden are exactly 0

    # Input-gate contribution. K padded to 128 (pad rows zero), so no lane slice
    # of h1 is needed on the critical path.
    g_x = jnp.dot(h1.astype(jnp.bfloat16), w_ref[r_ih0:r_ih1, :],
                  preferred_element_type=jnp.float32)                  # (B, 4H)

    gates = g_x + g_h + b_g             # PyTorch gate order: i, f, g, o

    # Full-width transcendentals over the whole (B, 4H) vreg, then slice.
    sig = jax.nn.sigmoid(gates)
    tnh = jnp.tanh(gates)
    i_g = sig[:, 0 * H:1 * H]
    f_g = sig[:, 1 * H:2 * H]
    g_g = tnh[:, 2 * H:3 * H]
    o_g = sig[:, 3 * H:4 * H]

    c_new = f_g * c_prev + i_g * g_g
    h_new = o_g * jnp.tanh(c_new)

    # Fused actor|critic head, zero padded to 128 lanes -> one unmasked store.
    head = jnp.dot(h_new.astype(jnp.bfloat16), w_ref[r_hd0:r_hd1, :],
                   preferred_element_type=jnp.float32) + b_hd          # (B, 128)

    head_ref[...] = head
    h_out_ref[...] = h_new
    c_out_ref[...] = c_new


# --------------------------------------------------------------------------- wrapper
def prepare_params(params):
    """One-time preprocessing: transposes, bias pre-sums, head fusion, slab packing."""
    H = params["whh"].shape[1]              # lstm_hidden_dim  (W_hh is (4H, H))
    hidden, input_dim = params["w1"].shape
    out_dim = params["wa"].shape[0]

    # Single-vreg-width assumptions (document per review): logits+value, 4H and
    # hidden must each fit in 128 lanes; H must be bf16-tile aligned.
    assert 4 * H <= LANES, "gate width 4H must fit 128 lanes (H <= 32)"
    assert hidden <= LANES and out_dim + 1 <= LANES
    assert H % 16 == 0, "bf16 tile-aligned recurrent blocks require H % 16 == 0"

    k1 = _round_up(input_dim, 16)           # fc1 contraction depth (zero padded)
    r_ih0, r_ih1 = k1, k1 + LANES           # W_ih^T block, K padded to 128
    r_hh0, r_hh1 = r_ih1, r_ih1 + H         # W_hh^T block
    r_hd0, r_hd1 = r_hh1, r_hh1 + H         # fused [actor | critic | 0] head block
    rows = _round_up(r_hd1, 16)

    w = jnp.zeros((rows, LANES), jnp.float32)
    w = w.at[:input_dim, :hidden].set(params["w1"].T)
    w = w.at[r_ih0:r_ih0 + hidden, :4 * H].set(params["wih"].T)
    w = w.at[r_hh0:r_hh0 + H, :4 * H].set(params["whh"].T)
    w = w.at[r_hd0:r_hd0 + H, :out_dim].set(params["wa"].T)
    w = w.at[r_hd0:r_hd0 + H, out_dim:out_dim + 1].set(params["wc"].T)
    w_slab = w.astype(jnp.bfloat16)         # bf16 weights; f32 accumulation in-kernel

    b = jnp.zeros((8, LANES), jnp.float32)  # biases stay f32
    b = b.at[0, :hidden].set(params["b1"])
    b = b.at[1, :4 * H].set(params["bih"] + params["bhh"])
    b = b.at[2, :out_dim].set(params["ba"])
    b = b.at[2, out_dim].set(params["bc"][0])

    kparams = dict(w_slab=w_slab, b_slab=b)
    meta = dict(H=H, out_dim=out_dim, input_dim=input_dim, k1=k1,
                r_ih0=r_ih0, r_ih1=r_ih1, r_hh0=r_hh0, r_hh1=r_hh1,
                r_hd0=r_hd0, r_hd1=r_hd1)
    return kparams, meta


def make_lstm_policy(params):
    """Returns (kparams, jitted forward(x, (h, c), kparams))."""
    kparams, meta = prepare_params(params)
    H, out_dim = meta["H"], meta["out_dim"]
    input_dim, k1 = meta["input_dim"], meta["k1"]

    kernel = functools.partial(
        _lstm_policy_kernel, H=H, k1=k1,
        r_ih0=meta["r_ih0"], r_ih1=meta["r_ih1"],
        r_hh0=meta["r_hh0"], r_hh1=meta["r_hh1"],
        r_hd0=meta["r_hd0"], r_hd1=meta["r_hd1"])

    vmem = pl.BlockSpec(memory_space=pltpu.MemorySpace.VMEM)

    def forward(x, lstm_state, kp):
        h0, c0 = lstm_state
        B = x.shape[0]
        h2d = h0.reshape(B, H)
        c2d = c0.reshape(B, H)
        x_pad = jnp.pad(x, ((0, 0), (0, k1 - input_dim)))

        head, h_new, c_new = pl.pallas_call(
            kernel,
            out_shape=(
                jax.ShapeDtypeStruct((B, LANES), jnp.float32),   # [logits|value|0]
                jax.ShapeDtypeStruct((B, H), jnp.float32),       # h_new
                jax.ShapeDtypeStruct((B, H), jnp.float32),       # c_new
            ),
            in_specs=[vmem] * 5,
            out_specs=(vmem, vmem, vmem),
            input_output_aliases={1: 1, 2: 2},                   # h, c in-place
        )(x_pad, h2d, c2d, kp["w_slab"], kp["b_slab"])

        logits = head[:, :out_dim]
        value = head[:, out_dim:out_dim + 1]
        return logits, value, (h_new.reshape(1, B, H), c_new.reshape(1, B, H))

    return kparams, jax.jit(forward)


# --------------------------------------------------------------------------- init & ref
def init_params(key, input_dim, hidden_dim, lstm_hidden_dim, output_dim):
    ks = jax.random.split(key, 10)

    def u(k, shape, fan_in):
        bound = 1.0 / jnp.sqrt(fan_in)
        return jax.random.uniform(k, shape, jnp.float32, -bound, bound)

    return {
        "w1":  u(ks[0], (hidden_dim, input_dim), input_dim),
        "b1":  u(ks[1], (hidden_dim,), input_dim),
        "wih": u(ks[2], (4 * lstm_hidden_dim, hidden_dim), lstm_hidden_dim),
        "bih": u(ks[3], (4 * lstm_hidden_dim,), lstm_hidden_dim),
        "whh": u(ks[4], (4 * lstm_hidden_dim, lstm_hidden_dim), lstm_hidden_dim),
        "bhh": u(ks[5], (4 * lstm_hidden_dim,), lstm_hidden_dim),
        "wa":  u(ks[6], (output_dim, lstm_hidden_dim), lstm_hidden_dim),
        "ba":  u(ks[7], (output_dim,), lstm_hidden_dim),
        "wc":  u(ks[8], (1, lstm_hidden_dim), lstm_hidden_dim),
        "bc":  u(ks[9], (1,), lstm_hidden_dim),
    }


def _reference_forward(x, lstm_state, params):
    # Pure-JAX f32 reference replicating the PyTorch module's semantics.
    h0, c0 = lstm_state
    B = x.shape[0]
    H = params["whh"].shape[1]
    h1 = jnp.maximum(x @ params["w1"].T + params["b1"], 0.0)
    gates = (h1 @ params["wih"].T + params["bih"]
             + h0.reshape(B, H) @ params["whh"].T + params["bhh"])
    i, f, g, o = jnp.split(gates, 4, axis=1)
    c_new = jax.nn.sigmoid(f) * c0.reshape(B, H) + jax.nn.sigmoid(i) * jnp.tanh(g)
    h_new = jax.nn.sigmoid(o) * jnp.tanh(c_new)
    logits = h_new @ params["wa"].T + params["ba"]
    value = h_new @ params["wc"].T + params["bc"]
    return logits, value, (h_new.reshape(1, B, H), c_new.reshape(1, B, H))


# --------------------------------------------------------------------------- main
if __name__ == "__main__":
    key = jax.random.PRNGKey(0)
    k_param, k_x1, k_x2 = jax.random.split(key, 3)

    batch = 8
    input_dim = 4            # observation dim (matches module comment)
    hidden_dim = 32
    lstm_hidden_dim = 32
    output_dim = 4

    params = init_params(k_param, input_dim, hidden_dim, lstm_hidden_dim, output_dim)
    x1 = jax.random.normal(k_x1, (batch, input_dim), jnp.float32)
    x2 = jax.random.normal(k_x2, (batch, input_dim), jnp.float32)
    # init_lstm_state: zeros of shape (1, batch, lstm_hidden)
    h0 = jnp.zeros((1, batch, lstm_hidden_dim), jnp.float32)
    c0 = jnp.zeros((1, batch, lstm_hidden_dim), jnp.float32)

    kparams, forward = make_lstm_policy(params)

    # Step 1
    logits, value, state = forward(x1, (h0, c0), kparams)
    jax.block_until_ready((logits, value, state))
    r_logits, r_value, r_state = _reference_forward(x1, (h0, c0), params)

    # Step 2 (exercises the recurrent path with non-zero h/c)
    logits2, value2, state2 = forward(x2, state, kparams)
    jax.block_until_ready((logits2, value2, state2))
    r_logits2, r_value2, r_state2 = _reference_forward(x2, r_state, params)

    # bf16 weights vs f32 reference -> loose-ish tolerance.
    tol = 2e-2
    assert jnp.allclose(logits, r_logits, atol=tol)
    assert jnp.allclose(value, r_value, atol=tol)
    assert jnp.allclose(state[0], r_state[0], atol=tol)
    assert jnp.allclose(state[1], r_state[1], atol=tol)
    assert jnp.allclose(logits2, r_logits2, atol=tol)
    assert jnp.allclose(value2, r_value2, atol=tol)
    assert jnp.allclose(state2[0], r_state2[0], atol=tol)
    assert jnp.allclose(state2[1], r_state2[1], atol=tol)

    print("KERNEL_OK")
</pallas_src>

<mosaic_0001>
module attributes {stable_mosaic.version = 11 : i64} {
  func.func @_lstm_policy_kernel(%arg0: memref<8x16xf32, #tpu.memory_space<vmem>>, %arg1: memref<8x32xf32, #tpu.memory_space<vmem>>, %arg2: memref<8x32xf32, #tpu.memory_space<vmem>>, %arg3: memref<208x128xbf16, #tpu.memory_space<vmem>>, %arg4: memref<8x128xf32, #tpu.memory_space<vmem>>, %arg5: memref<8x128xf32, #tpu.memory_space<vmem>>, %arg6: memref<8x32xf32, #tpu.memory_space<vmem>>, %arg7: memref<8x32xf32, #tpu.memory_space<vmem>>) attributes {dimension_semantics = [], scalar_prefetch = 0 : i64, scratch_operands = 0 : i64, tpu.core_type = #tpu.core_type<tc>} {
    %c0 = arith.constant 0 : index
    %c0_0 = arith.constant 0 : index
    %0 = vector.load %arg0[%c0, %c0_0] : memref<8x16xf32, #tpu.memory_space<vmem>>, vector<8x16xf32>
    %c0_1 = arith.constant 0 : index
    %c0_2 = arith.constant 0 : index
    %1 = vector.load %arg1[%c0_1, %c0_2] : memref<8x32xf32, #tpu.memory_space<vmem>>, vector<8x32xf32>
    %c0_3 = arith.constant 0 : index
    %c0_4 = arith.constant 0 : index
    %2 = vector.load %arg2[%c0_3, %c0_4] : memref<8x32xf32, #tpu.memory_space<vmem>>, vector<8x32xf32>
    %c0_5 = arith.constant 0 : index
    %c0_6 = arith.constant 0 : index
    %3 = vector.load %arg4[%c0_5, %c0_6] : memref<8x128xf32, #tpu.memory_space<vmem>>, vector<8x128xf32>
    %4 = vector.extract_strided_slice %3 {offsets = [0, 0], sizes = [1, 128], strides = [1, 1]} : vector<8x128xf32> to vector<1x128xf32>
    %5 = vector.extract_strided_slice %3 {offsets = [1, 0], sizes = [1, 128], strides = [1, 1]} : vector<8x128xf32> to vector<1x128xf32>
    %6 = vector.extract_strided_slice %3 {offsets = [2, 0], sizes = [1, 128], strides = [1, 1]} : vector<8x128xf32> to vector<1x128xf32>
    %7 = arith.truncf %1 : vector<8x32xf32> to vector<8x32xbf16>
    %c144 = arith.constant 144 : index
    %c0_7 = arith.constant 0 : index
    %8 = vector.load %arg3[%c144, %c0_7] : memref<208x128xbf16, #tpu.memory_space<vmem>>, vector<32x128xbf16>
    %cst = arith.constant dense<0.000000e+00> : vector<8x128xf32>
    %9 = tpu.matmul %7, %8, %cst {dimension_numbers = #tpu.dot_dimension_numbers<[1], [0], [0], [1], [0, 0, 1, 1], [], []>} : vector<8x32xbf16>, vector<32x128xbf16>, vector<8x128xf32> -> vector<8x128xf32>
    %10 = arith.truncf %0 : vector<8x16xf32> to vector<8x16xbf16>
    %c0_8 = arith.constant 0 : index
    %c0_9 = arith.constant 0 : index
    %11 = vector.load %arg3[%c0_8, %c0_9] : memref<208x128xbf16, #tpu.memory_space<vmem>>, vector<16x128xbf16>
    %cst_10 = arith.constant dense<0.000000e+00> : vector<8x128xf32>
    %12 = tpu.matmul %10, %11, %cst_10 {dimension_numbers = #tpu.dot_dimension_numbers<[1], [0], [0], [1], [0, 0, 1, 1], [], []>} : vector<8x16xbf16>, vector<16x128xbf16>, vector<8x128xf32> -> vector<8x128xf32>
    %13 = vector.broadcast %4 : vector<1x128xf32> to vector<8x128xf32>
    %14 = arith.addf %12, %13 : vector<8x128xf32>
    %cst_11 = arith.constant 0.000000e+00 : f32
    %15 = vector.broadcast %cst_11 : f32 to vector<8x128xf32>
    %16 = arith.maximumf %14, %15 : vector<8x128xf32>
    %17 = arith.truncf %16 : vector<8x128xf32> to vector<8x128xbf16>
    %c16 = arith.constant 16 : index
    %c0_12 = arith.constant 0 : index
    %18 = vector.load %arg3[%c16, %c0_12] : memref<208x128xbf16, #tpu.memory_space<vmem>>, vector<128x128xbf16>
    %cst_13 = arith.constant dense<0.000000e+00> : vector<8x128xf32>
    %19 = tpu.matmul %17, %18, %cst_13 {dimension_numbers = #tpu.dot_dimension_numbers<[1], [0], [0], [1], [0, 0, 1, 1], [], []>} : vector<8x128xbf16>, vector<128x128xbf16>, vector<8x128xf32> -> vector<8x128xf32>
    %20 = arith.addf %19, %9 : vector<8x128xf32>
    %21 = vector.broadcast %5 : vector<1x128xf32> to vector<8x128xf32>
    %22 = arith.addf %20, %21 : vector<8x128xf32>
    %23 = arith.negf %22 : vector<8x128xf32>
    %24 = math.exp %23 : vector<8x128xf32>
    %cst_14 = arith.constant 1.000000e+00 : f32
    %25 = vector.broadcast %cst_14 : f32 to vector<8x128xf32>
    %26 = arith.addf %25, %24 : vector<8x128xf32>
    %27 = arith.divf %25, %26 : vector<8x128xf32>
    %28 = math.tanh %22 : vector<8x128xf32>
    %29 = vector.extract_strided_slice %27 {offsets = [0, 0], sizes = [8, 32], strides = [1, 1]} : vector<8x128xf32> to vector<8x32xf32>
    %30 = vector.extract_strided_slice %27 {offsets = [0, 32], sizes = [8, 32], strides = [1, 1]} : vector<8x128xf32> to vector<8x32xf32>
    %31 = vector.extract_strided_slice %28 {offsets = [0, 64], sizes = [8, 32], strides = [1, 1]} : vector<8x128xf32> to vector<8x32xf32>
    %32 = vector.extract_strided_slice %27 {offsets = [0, 96], sizes = [8, 32], strides = [1, 1]} : vector<8x128xf32> to vector<8x32xf32>
    %33 = arith.mulf %30, %2 : vector<8x32xf32>
    %34 = arith.mulf %29, %31 : vector<8x32xf32>
    %35 = arith.addf %33, %34 : vector<8x32xf32>
    %36 = math.tanh %35 : vector<8x32xf32>
    %37 = arith.mulf %32, %36 : vector<8x32xf32>
    %38 = arith.truncf %37 : vector<8x32xf32> to vector<8x32xbf16>
    %c176 = arith.constant 176 : index
    %c0_15 = arith.constant 0 : index
    %39 = vector.load %arg3[%c176, %c0_15] : memref<208x128xbf16, #tpu.memory_space<vmem>>, vector<32x128xbf16>
    %cst_16 = arith.constant dense<0.000000e+00> : vector<8x128xf32>
    %40 = tpu.matmul %38, %39, %cst_16 {dimension_numbers = #tpu.dot_dimension_numbers<[1], [0], [0], [1], [0, 0, 1, 1], [], []>} : vector<8x32xbf16>, vector<32x128xbf16>, vector<8x128xf32> -> vector<8x128xf32>
    %41 = vector.broadcast %6 : vector<1x128xf32> to vector<8x128xf32>
    %42 = arith.addf %40, %41 : vector<8x128xf32>
    %c0_17 = arith.constant 0 : index
    %c0_18 = arith.constant 0 : index
    %43 = vector.load %arg5[%c0_17, %c0_18] : memref<8x128xf32, #tpu.memory_space<vmem>>, vector<8x128xf32>
    tpu.vector_store %arg5[%c0_17, %c0_18], %42 {strides = array<i32>} : memref<8x128xf32, #tpu.memory_space<vmem>>, vector<8x128xf32>,
    %c0_19 = arith.constant 0 : index
    %c0_20 = arith.constant 0 : index
    %44 = vector.load %arg6[%c0_19, %c0_20] : memref<8x32xf32, #tpu.memory_space<vmem>>, vector<8x32xf32>
    tpu.vector_store %arg6[%c0_19, %c0_20], %37 {strides = array<i32>} : memref<8x32xf32, #tpu.memory_space<vmem>>, vector<8x32xf32>,
    %c0_21 = arith.constant 0 : index
    %c0_22 = arith.constant 0 : index
    %45 = vector.load %arg7[%c0_21, %c0_22] : memref<8x32xf32, #tpu.memory_space<vmem>>, vector<8x32xf32>
    tpu.vector_store %arg7[%c0_21, %c0_22], %35 {strides = array<i32>} : memref<8x32xf32, #tpu.memory_space<vmem>>, vector<8x32xf32>,
    return
  }
}

</mosaic_0001>

<llo_original>
// kernel: forward.1
$region0: #{forward.1}
  #allocation0 [shape = 'u32[]', space=smem, size = 0x4, offset = 0x4, fixed_abs, tag = 'smem constant byte address 0x4 - core index']
  #allocation1 [shape = 'u32[72,128]{1,0:T(1,128)}', space=vmem, size = 0x9000, scoped, tag = 'internal scratch']
  %s0 = inlined_call_operand.vmem [shape: f32[8,16], index: 0, kind: input, shape index: {}]
  %s1 = inlined_call_operand.vmem [shape: f32[8,32], index: 1, kind: input, shape index: {}, may-alias: {1,6}]
  %s2 = inlined_call_operand.vmem [shape: f32[8,32], index: 2, kind: input, shape index: {}, may-alias: {2,7}]
  %s3 = inlined_call_operand.hbm [shape: bf16[208,128], index: 3, kind: input, shape index: {}]
  %s4 = inlined_call_operand.vmem [shape: f32[8,128], index: 4, kind: input, shape index: {}]
  %s5 = inlined_call_operand.vmem [shape: f32[8,128], index: 5, kind: output, shape index: {0}]
  %s6 = inlined_call_operand.vmem [shape: f32[8,32], index: 6, kind: output, shape index: {1}, may-alias: {1,6}]
  %s7 = inlined_call_operand.vmem [shape: f32[8,32], index: 7, kind: output, shape index: {2}, may-alias: {2,7}]
  %8 = xla_tuple %s5, %s6, %s7
  %s9 = sld [smem:[#allocation0]]
  $region50: #{forward.1} parent=0
    _
  %s11 = ssub.s32 1, %s9
  %s12 = scalar_select 0, %s11, %s9
  $region1: #{forward.1} parent=0
    #allocation2 [shape = 'u8[53248]{0}', space=vmem, size = 0xd000, scoped, tag = 'input window, operand 3, single buffered']
    #allocation3 [shape = 's32[1]{0}', space=sflag, size = 0x4, scoped, tag = 'scoped memory for forward.1']
    %13 = vsyncpa [#allocation3], 0
    // Predicated region
    $region2: #{forward.1} parent=1 // pred_check
      _
    $region3: #{forward.1} parent=1 // pred_check_branch
      %15 = sbr.rel (0) target = $region5
    $region4: #{forward.1} parent=1 // pred_region
      _
    $region5: #{forward.1} parent=1 // pred_fallthru
      _
    // Predicated region
    $region6: #{forward.1} parent=1 // pred_check
      _
    $region7: #{forward.1} parent=1 // pred_check_branch
      %17 = sbr.rel (0) target = $region9
    $region8: #{forward.1} parent=1 // pred_region
      _
    $region9: #{forward.1} parent=1 // pred_fallthru
      _
    // Predicated region
    $region10: #{forward.1} parent=1 // pred_check
      _
    $region11: #{forward.1} parent=1 // pred_check_branch
      %19 = sbr.rel (0) target = $region13
    $region12: #{forward.1} parent=1 // pred_region
      _
    $region13: #{forward.1} parent=1 // pred_fallthru
      _
    // Predicated region
    $region14: #{forward.1} parent=1 // pred_check
      _
    $region15: #{forward.1} parent=1 // pred_check_branch
      %21 = sbr.rel (0) target = $region17
    $region16: #{forward.1} parent=1 // pred_region
      %23 = vsyncadd [#allocation3], 0
      %s24 = sshll.u32 %s3, 4
      %s25 = int_to_ptr.hbm [resolvable:$true] %s24
      %s26 = sshll.u32 [#allocation2], 4
      %s27 = int_to_ptr.vmem [resolvable:$true] %s26
      %32 = dma.hbm_to_vmem [thread:$0]  %s25, 1664, %s27, [#allocation3], 64, 64, 4
    $region17: #{forward.1} parent=1 // pred_fallthru
      _
    // Predicated region
    $region18: #{forward.1} parent=1 // pred_check
      _
    $region19: #{forward.1} parent=1 // pred_check_branch
      %34 = sbr.rel (0) target = $region21
    $region20: #{forward.1} parent=1 // pred_region
      _
    $region21: #{forward.1} parent=1 // pred_fallthru
      _
    // Predicated region
    $region22: #{forward.1} parent=1 // pred_check
      _
    $region23: #{forward.1} parent=1 // pred_check_branch
      %36 = sbr.rel (0) target = $region25
    $region24: #{forward.1} parent=1 // pred_region
      %38 = dma.done [#allocation3], 1664
    $region25: #{forward.1} parent=1 // pred_fallthru
      _
    %v40 = vld [vmem:[%s0] sm:$0xff]
    %v41 = vld [vmem:[%s1] sm:$0xff]
    %v42 = vld [vmem:[%s2] sm:$0xff]
    %v43 = vld [vmem:[%s4] sm:$0xff]
    %v44 = vpack.c.bf16 %v41, %v41
    %v45 = vld [vmem:[#allocation2 + $0x48] sm:$0xf]
    %v46 = vld [vmem:[#allocation2 + $0x4c] sm:$0xf]
    %v47 = vld [vmem:[#allocation2 + $0x50] sm:$0xf]
    %v48 = vld [vmem:[#allocation2 + $0x54] sm:$0xf]
    %v53 = vunpack.c.l.b16 %v45
    %v54 = vunpack.c.l.b16 %v46
    %v55 = vunpack.c.l.b16 %v47
    %v56 = vunpack.c.l.b16 %v48
    %v57 = vpack.c.b16 %v54, %v53
    %v58 = vpack.c.b16 %v56, %v55
    %vm61 = vcmask 261120
    %v63 = vsel %vm61, %v44, 0
    %65 = vmatpush.bf16.msra.mxu0 0
    %66 = vmatpush.bf16.msra.mxu0 0
    %67 = vmatpush.bf16.msra.mxu0 0
    %68 = vmatpush.bf16.msra.mxu0 0
    %69 = vmatpush.bf16.msra.mxu0 0
    %70 = vmatpush.bf16.msra.mxu0 0
    %71 = vmatpush.bf16.msra.mxu0 %v58
    %72 = vmatpush.bf16.msra.mxu0 %v57
    %73 = vmatmul.bf16.gmra.mxu0 %v63
    %v74 = vpop.f32.mrf.mxu0
    %v75 = vadd.f32 0.0, %v74
    %v76 = vpop.f32.mrf.mxu0
    %77 = vdwg.mxu0
    %v78 = vpack.c.bf16 %v40, %v40
    %v79 = vld [vmem:[#allocation2] sm:$0xf]
    %v80 = vld [vmem:[#allocation2 + $0x4] sm:$0xf]
    %v81 = vperm.slane %v43, 0
    %v84 = vunpack.c.l.b16 %v79
    %v85 = vunpack.c.l.b16 %v80
    %v86 = vpack.c.b16 %v85, %v84
    %vm88 = vcmask 130048
    %v90 = vsel %vm88, %v78, 0
    %92 = vmatpush.bf16.msra.mxu0 0
    %93 = vmatpush.bf16.msra.mxu0 0
    %94 = vmatpush.bf16.msra.mxu0 0
    %95 = vmatpush.bf16.msra.mxu0 0
    %96 = vmatpush.bf16.msra.mxu0 0
    %97 = vmatpush.bf16.msra.mxu0 0
    %98 = vmatpush.bf16.msra.mxu0 0
    %99 = vmatpush.bf16.msra.mxu0 %v86
    %100 = vmatmul.bf16.gmra.mxu0 %v90
    %v101 = vpop.f32.mrf.mxu0
    %v102 = vadd.f32 %v81, %v101
    %v103 = vpop.f32.mrf.mxu0
    %104 = vdwg.mxu0
    %v105 = vmax.f32 %v102, 0.0
    %v106 = vpack.c.bf16 %v105, %v105
    %v107 = vld [vmem:[#allocation2 + $0x8] sm:$0xf]
    %v108 = vld [vmem:[#allocation2 + $0xc] sm:$0xf]
    %v109 = vld [vmem:[#allocation2 + $0x10] sm:$0xf]
    %v110 = vld [vmem:[#allocation2 + $0x14] sm:$0xf]
    %v111 = vld [vmem:[#allocation2 + $0x18] sm:$0xf]
    %v112 = vld [vmem:[#allocation2 + $0x1c] sm:$0xf]
    %v113 = vld [vmem:[#allocation2 + $0x20] sm:$0xf]
    %v114 = vld [vmem:[#allocation2 + $0x24] sm:$0xf]
    %v115 = vld [vmem:[#allocation2 + $0x28] sm:$0xf]
    %v116 = vld [vmem:[#allocation2 + $0x2c] sm:$0xf]
    %v117 = vld [vmem:[#allocation2 + $0x30] sm:$0xf]
    %v118 = vld [vmem:[#allocation2 + $0x34] sm:$0xf]
    %v119 = vld [vmem:[#allocation2 + $0x38] sm:$0xf]
    %v120 = vld [vmem:[#allocation2 + $0x3c] sm:$0xf]
    %v121 = vld [vmem:[#allocation2 + $0x40] sm:$0xf]
    %v122 = vld [vmem:[#allocation2 + $0x44] sm:$0xf]
    %v139 = vunpack.c.l.b16 %v107
    %v140 = vunpack.c.l.b16 %v108
    %v141 = vunpack.c.l.b16 %v109
    %v142 = vunpack.c.l.b16 %v110
    %v143 = vunpack.c.l.b16 %v111
    %v144 = vunpack.c.l.b16 %v112
    %v145 = vunpack.c.l.b16 %v113
    %v146 = vunpack.c.l.b16 %v114
    %v147 = vunpack.c.l.b16 %v115
    %v148 = vunpack.c.l.b16 %v116
    %v149 = vunpack.c.l.b16 %v117
    %v150 = vunpack.c.l.b16 %v118
    %v151 = vunpack.c.l.b16 %v119
    %v152 = vunpack.c.l.b16 %v120
    %v153 = vunpack.c.l.b16 %v121
    %v154 = vunpack.c.l.b16 %v122
    %v155 = vpack.c.b16 %v140, %v139
    %v156 = vpack.c.b16 %v142, %v141
    %v157 = vpack.c.b16 %v144, %v143
    %v158 = vpack.c.b16 %v146, %v145
    %v159 = vpack.c.b16 %v148, %v147
    %v160 = vpack.c.b16 %v150, %v149
    %v161 = vpack.c.b16 %v152, %v151
    %v162 = vpack.c.b16 %v154, %v153
    %171 = vmatpush.bf16.msra.mxu0 %v162
    %172 = vmatpush.bf16.msra.mxu0 %v161
    %173 = vmatpush.bf16.msra.mxu0 %v160
    %174 = vmatpush.bf16.msra.mxu0 %v159
    %175 = vmatpush.bf16.msra.mxu0 %v158
    %176 = vmatpush.bf16.msra.mxu0 %v157
    %177 = vmatpush.bf16.msra.mxu0 %v156
    %178 = vmatpush.bf16.msra.mxu0 %v155
    %179 = vmatmul.bf16.gmra.mxu0 %v106
    %v180 = vpop.f32.mrf.mxu0
    %v181 = vadd.f32 %v75, %v180
    %v182 = vpop.f32.mrf.mxu0
    %183 = vdwg.mxu0
    %v184 = vperm.slane %v43, 1
    %v185 = vadd.f32 %v181, %v184
    %v186 = vxor.u32 %v185, 2147483648
    %v187 = vmul.f32 %v186, 1.442695
    %v188 = vpow.pop %v187
    %v189 = vadd.f32 %v188, 1.0
    %v190 = vrcp.pop %v189
    %v191 = vmul.f32 %v189, %v190
    %v192 = vsub.f32 1.0, %v191
    %v193 = vmul.f32 %v190, %v192
    %v194 = vadd.f32 %v190, %v193
    %vm195 = vweird.f32 %v189
    %vm196 = vweird.f32 %v190
    %vm197 = vmor %vm195, %vm196
    %v198 = vsel %vm197, %v190, %v194
    %v199 = vand.u32 2147483647, %v189
    %vm200 = vcmp.eq.f32.partialorder %v199, 8.507059e+37
    %v201 = vand.u32 %v189, 2147483648
    %v202 = vor.u32 1.1754944e-38, %v201
    %v203 = vsel %vm200, %v202, %v198
    %v204 = vmul.f32 1.0, %v203
    %v205 = vtanh.pop %v185
    %207 = vrot.lane.b32.xlu0 %v42, 32
    %v208 = vpop.permute.xlu0 %207
    %v210 = vmul.f32 %v204, %v208
    %212 = vrot.lane.b32.xlu0 %v205, 64
    %v213 = vpop.permute.xlu0 %212
    %v215 = vmul.f32 %v204, %v213
    %217 = vrot.lane.b32.xlu0 %v215, 32
    %v218 = vpop.permute.xlu0 %217
    %v220 = vadd.f32 %v210, %v218
    %v221 = vtanh.pop %v220
    %223 = vrot.lane.b32.xlu0 %v221, 64
    %v224 = vpop.permute.xlu0 %223
    %v226 = vmul.f32 %v204, %v224
    %v227 = vpack.c.bf16 %v226, %v226
    %v228 = vld [vmem:[#allocation2 + $0x58] sm:$0xf]
    %v229 = vld [vmem:[#allocation2 + $0x5c] sm:$0xf]
    %v230 = vld [vmem:[#allocation2 + $0x60] sm:$0xf]
    %v231 = vld [vmem:[#allocation2 + $0x64] sm:$0xf]
    %v232 = vperm.slane %v43, 2
    %234 = vrot.lane.b32.xlu0 %v227, 32
    %v235 = vpop.permute.xlu0 %234
    %v240 = vunpack.c.l.b16 %v228
    %v241 = vunpack.c.l.b16 %v229
    %v242 = vunpack.c.l.b16 %v230
    %v243 = vunpack.c.l.b16 %v231
    %v244 = vpack.c.b16 %v241, %v240
    %v245 = vpack.c.b16 %v243, %v242
    %v249 = vsel %vm61, %v235, 0
    %251 = vmatpush.bf16.msra.mxu0 0
    %252 = vmatpush.bf16.msra.mxu0 0
    %253 = vmatpush.bf16.msra.mxu0 0
    %254 = vmatpush.bf16.msra.mxu0 0
    %255 = vmatpush.bf16.msra.mxu0 0
    %256 = vmatpush.bf16.msra.mxu0 0
    %257 = vmatpush.bf16.msra.mxu0 %v245
    %258 = vmatpush.bf16.msra.mxu0 %v244
    %259 = vmatmul.bf16.gmra.mxu0 %v249
    %v260 = vpop.f32.mrf.mxu0
    %v261 = vadd.f32 %v232, %v260
    %v262 = vpop.f32.mrf.mxu0
    %263 = vdwg.mxu0
    %264 = vst [vmem:[%s5] sm:$0xff] %v261
    %266 = vrot.lane.b32.xlu0 %v226, 32
    %v267 = vpop.permute.xlu0 %266
    %269 = vst.msk [vmem:[%s6] sm:$0xff] %vm61, %v267
    %271 = vrot.lane.b32.xlu0 %v220, 96
    %v272 = vpop.permute.xlu0 %271
    %274 = vst.msk [vmem:[%s7] sm:$0xff] %vm61, %v272
    // Predicated region
    $region26: #{forward.1} parent=1 // pred_check
      _
    $region27: #{forward.1} parent=1 // pred_check_branch
      %276 = sbr.rel (0) target = $region29
    $region28: #{forward.1} parent=1 // pred_region
      _
    $region29: #{forward.1} parent=1 // pred_fallthru
      _
    // Predicated region
    $region30: #{forward.1} parent=1 // pred_check
      _
    $region31: #{forward.1} parent=1 // pred_check_branch
      %278 = sbr.rel (0) target = $region33
    $region32: #{forward.1} parent=1 // pred_region
      _
    $region33: #{forward.1} parent=1 // pred_fallthru
      _
    // Predicated region
    $region34: #{forward.1} parent=1 // pred_check
      _
    $region35: #{forward.1} parent=1 // pred_check_branch
      %280 = sbr.rel (0) target = $region37
    $region36: #{forward.1} parent=1 // pred_region
      _
    $region37: #{forward.1} parent=1 // pred_fallthru
      _
    // Predicated region
    $region38: #{forward.1} parent=1 // pred_check
      _
    $region39: #{forward.1} parent=1 // pred_check_branch
      %282 = sbr.rel (0) target = $region41
    $region40: #{forward.1} parent=1 // pred_region
      _
    $region41: #{forward.1} parent=1 // pred_fallthru
      _
    // Predicated region
    $region42: #{forward.1} parent=1 // pred_check
      _
    $region43: #{forward.1} parent=1 // pred_check_branch
      %284 = sbr.rel (0) target = $region45
    $region44: #{forward.1} parent=1 // pred_region
      _
    $region45: #{forward.1} parent=1 // pred_fallthru
      _
    // Predicated region
    $region46: #{forward.1} parent=1 // pred_check
      _
    $region47: #{forward.1} parent=1 // pred_check_branch
      %286 = sbr.rel (0) target = $region49
    $region48: #{forward.1} parent=1 // pred_region
      _
    $region49: #{forward.1} parent=1 // pred_fallthru
      _
    %287 = vsyncpa [#allocation3], 1

</llo_original>
